<compile_context>
chip_gen: v6e
topology: v6e:2x2x1
jax: 0.10.0
libtpu: 0.0.40
codegen_flags: <defaults>
</compile_context>

<pallas_src>
import numpy as np
import jax
import jax.numpy as jnp
from jax.experimental import pallas as pl
from jax.experimental.pallas import tpu as pltpu

# ----- model config (small, consistent with MMoEModel.__init__) -----
BATCH = 16                # 2 grid steps of BB=8 -> megacore-friendly on v7x
INPUT_NUM = 16            # numerical_x feature dim
EMBED_DIM = 32
BOTTOM_MLP_DIMS = (64, 32)
TOWER_MLP_DIMS = (32, 16)
TASK_NUM = 2
EXPERT_NUM = 3
DROPOUT = 0.2             # inert in inference-mode forward
BN_EPS = 1e-5

BB = 8                    # batch tile; raise to 256-1024 for large real batches

D0, D1 = BOTTOM_MLP_DIMS
T0, T1 = TOWER_MLP_DIMS
E, T = EXPERT_NUM, TASK_NUM


def _rup8(n):
    return ((n + 7) // 8) * 8


# ----- packed weight blob layout (all row offsets are 8-aligned) -----
R_WNUM = 0                                 # (INPUT_NUM, EMBED_DIM)
R_WGATE = R_WNUM + _rup8(INPUT_NUM)        # (EMBED_DIM, T*E)        concat over tasks
R_WE0 = R_WGATE + _rup8(EMBED_DIM)         # (EMBED_DIM, E*D0)       concat over experts
R_WE1 = R_WE0 + _rup8(EMBED_DIM)           # (E*D0, E*D1)            block-diagonal
R_WT0 = R_WE1 + _rup8(E * D0)              # (T*D1, T*T0)            block-diagonal
R_WT1 = R_WT0 + _rup8(T * D1)              # (T*T0, T*T1)            block-diagonal
R_WT2 = R_WT1 + _rup8(T * T0)              # (T*T1, T)               block-diagonal heads
R_BIAS = R_WT2 + _rup8(T * T1)             # 7 bias rows
N_ROWS = _rup8(R_BIAS + 7)                 # 440
LANES = max(EMBED_DIM, T * E, E * D0, E * D1, T * T0, T * T1, T)   # 192


def mmoe_kernel(x_ref, w_ref, out_ref):
    x = x_ref[...]                                                  # (BB, INPUT_NUM)

    # Static slices of the single packed weight blob.
    wnum = w_ref[R_WNUM:R_WNUM + INPUT_NUM, 0:EMBED_DIM]
    wgate = w_ref[R_WGATE:R_WGATE + EMBED_DIM, 0:T * E]
    we0 = w_ref[R_WE0:R_WE0 + EMBED_DIM, 0:E * D0]
    we1 = w_ref[R_WE1:R_WE1 + E * D0, 0:E * D1]
    wt0 = w_ref[R_WT0:R_WT0 + T * D1, 0:T * T0]
    wt1 = w_ref[R_WT1:R_WT1 + T * T0, 0:T * T1]
    wt2 = w_ref[R_WT2:R_WT2 + T * T1, 0:T]
    bnum = w_ref[R_BIAS + 0:R_BIAS + 1, 0:EMBED_DIM]
    bgate = w_ref[R_BIAS + 1:R_BIAS + 2, 0:T * E]
    be0 = w_ref[R_BIAS + 2:R_BIAS + 3, 0:E * D0]
    be1 = w_ref[R_BIAS + 3:R_BIAS + 4, 0:E * D1]
    bt0 = w_ref[R_BIAS + 4:R_BIAS + 5, 0:T * T0]
    bt1 = w_ref[R_BIAS + 5:R_BIAS + 6, 0:T * T1]
    bt2 = w_ref[R_BIAS + 6:R_BIAS + 7, 0:T]

    # numerical_layer: Linear(input_num -> embed_dim)
    emb = jnp.dot(x, wnum, preferred_element_type=jnp.float32) + bnum            # (BB, 32)

    # All experts at once: layer 1 (concatenated W), layer 2 (block-diagonal W).
    # BN folded into the Linear weights; Dropout is identity in eval.
    h1 = jnp.maximum(jnp.dot(emb, we0, preferred_element_type=jnp.float32) + be0, 0.0)   # (BB, E*D0)
    h2 = jnp.maximum(jnp.dot(h1, we1, preferred_element_type=jnp.float32) + be1, 0.0)    # (BB, E*D1)

    # Both gates in one matmul; softmax per task group of EXPERT_NUM lanes.
    logits = jnp.dot(emb, wgate, preferred_element_type=jnp.float32) + bgate             # (BB, T*E)

    # Gate-weighted expert mixing for both tasks -> lane-concatenated (BB, T*D1).
    tfs = []
    for t in range(T):
        lg = logits[:, t * E:(t + 1) * E]
        m = jnp.max(lg, axis=-1, keepdims=True)
        p = jnp.exp(lg - m)
        g = p / jnp.sum(p, axis=-1, keepdims=True)                                       # (BB, E)
        tf = g[:, 0:1] * h2[:, 0:D1]
        for e in range(1, E):
            tf = tf + g[:, e:e + 1] * h2[:, e * D1:(e + 1) * D1]
        tfs.append(tf)                                                                   # (BB, D1)
    tf_cat = jnp.concatenate(tfs, axis=-1)                                               # (BB, T*D1)

    # Both towers fused via block-diagonal weights; block-diag heads -> (BB, T) directly.
    u0 = jnp.maximum(jnp.dot(tf_cat, wt0, preferred_element_type=jnp.float32) + bt0, 0.0)  # (BB, T*T0)
    u1 = jnp.maximum(jnp.dot(u0, wt1, preferred_element_type=jnp.float32) + bt1, 0.0)      # (BB, T*T1)
    y = jnp.dot(u1, wt2, preferred_element_type=jnp.float32) + bt2                         # (BB, T)
    out_ref[...] = jax.nn.sigmoid(y)


def mmoe_forward(x, wblob):
    batch = x.shape[0]
    assert batch % BB == 0
    return pl.pallas_call(
        mmoe_kernel,
        out_shape=jax.ShapeDtypeStruct((batch, TASK_NUM), jnp.float32),
        grid=(batch // BB,),
        in_specs=[pl.BlockSpec((BB, INPUT_NUM), lambda i: (i, 0)),
                  pl.BlockSpec((N_ROWS, LANES), lambda i: (0, 0))],
        out_specs=pl.BlockSpec((BB, TASK_NUM), lambda i: (i, 0)),
        compiler_params=pltpu.CompilerParams(dimension_semantics=("parallel",)),
    )(x, wblob)


# ----- deterministic parameter construction (synthetic, PyTorch-like init) -----
def _linear(key, fan_in, fan_out):
    k1, k2 = jax.random.split(key)
    bound = 1.0 / np.sqrt(fan_in)
    w = jax.random.uniform(k1, (fan_in, fan_out), jnp.float32, -bound, bound)
    b = jax.random.uniform(k2, (fan_out,), jnp.float32, -bound, bound)
    return w, b


def _linear_bn_folded(key, fan_in, fan_out):
    k1, k2, k3, k4, k5 = jax.random.split(key, 5)
    w, b = _linear(k1, fan_in, fan_out)
    gamma = jax.random.uniform(k2, (fan_out,), jnp.float32, 0.8, 1.2)
    beta = 0.1 * jax.random.normal(k3, (fan_out,), jnp.float32)
    rmean = 0.1 * jax.random.normal(k4, (fan_out,), jnp.float32)
    rvar = jax.random.uniform(k5, (fan_out,), jnp.float32, 0.5, 1.5)
    scale = gamma / jnp.sqrt(rvar + BN_EPS)
    return w * scale[None, :], (b - rmean) * scale + beta


def init_params(key):
    keys = iter(jax.random.split(key, 64))
    P = {}

    w, b = _linear(next(keys), INPUT_NUM, EMBED_DIM)
    P["wnum"], P["bnum"] = w, b.reshape(1, EMBED_DIM)

    wg, bg = [], []
    for _ in range(TASK_NUM):
        w, b = _linear(next(keys), EMBED_DIM, EXPERT_NUM)
        wg.append(w); bg.append(b.reshape(1, EXPERT_NUM))
    P["wgate"], P["bgate"] = jnp.stack(wg), jnp.stack(bg)

    w0s, b0s, w1s, b1s = [], [], [], []
    for _ in range(EXPERT_NUM):
        w, b = _linear_bn_folded(next(keys), EMBED_DIM, D0)
        w0s.append(w); b0s.append(b.reshape(1, D0))
        w, b = _linear_bn_folded(next(keys), D0, D1)
        w1s.append(w); b1s.append(b.reshape(1, D1))
    P["we0"], P["be0"] = jnp.stack(w0s), jnp.stack(b0s)
    P["we1"], P["be1"] = jnp.stack(w1s), jnp.stack(b1s)

    wt0, bt0, wt1, bt1, wt2, bt2 = [], [], [], [], [], []
    for _ in range(TASK_NUM):
        w, b = _linear_bn_folded(next(keys), D1, T0)
        wt0.append(w); bt0.append(b.reshape(1, T0))
        w, b = _linear_bn_folded(next(keys), T0, T1)
        wt1.append(w); bt1.append(b.reshape(1, T1))
        w, b = _linear(next(keys), T1, 1)
        wt2.append(w); bt2.append(b.reshape(1, 1))
    P["wt0"], P["bt0"] = jnp.stack(wt0), jnp.stack(bt0)
    P["wt1"], P["bt1"] = jnp.stack(wt1), jnp.stack(bt1)
    P["wt2"], P["bt2"] = jnp.stack(wt2), jnp.stack(bt2)
    return P


# ----- host-side packing: concat / block-diagonal fused weights in one blob -----
def pack_params(P):
    Pn = {k: np.asarray(v) for k, v in P.items()}
    W = np.zeros((N_ROWS, LANES), np.float32)
    W[R_WNUM:R_WNUM + INPUT_NUM, 0:EMBED_DIM] = Pn["wnum"]
    W[R_WGATE:R_WGATE + EMBED_DIM, 0:T * E] = np.concatenate(
        [Pn["wgate"][t] for t in range(T)], axis=1)
    W[R_WE0:R_WE0 + EMBED_DIM, 0:E * D0] = np.concatenate(
        [Pn["we0"][e] for e in range(E)], axis=1)
    for e in range(E):
        W[R_WE1 + e * D0:R_WE1 + (e + 1) * D0, e * D1:(e + 1) * D1] = Pn["we1"][e]
    for t in range(T):
        W[R_WT0 + t * D1:R_WT0 + (t + 1) * D1, t * T0:(t + 1) * T0] = Pn["wt0"][t]
        W[R_WT1 + t * T0:R_WT1 + (t + 1) * T0, t * T1:(t + 1) * T1] = Pn["wt1"][t]
        W[R_WT2 + t * T1:R_WT2 + (t + 1) * T1, t:t + 1] = Pn["wt2"][t]
    W[R_BIAS + 0, 0:EMBED_DIM] = Pn["bnum"][0]
    W[R_BIAS + 1, 0:T * E] = np.concatenate([Pn["bgate"][t, 0] for t in range(T)])
    W[R_BIAS + 2, 0:E * D0] = np.concatenate([Pn["be0"][e, 0] for e in range(E)])
    W[R_BIAS + 3, 0:E * D1] = np.concatenate([Pn["be1"][e, 0] for e in range(E)])
    W[R_BIAS + 4, 0:T * T0] = np.concatenate([Pn["bt0"][t, 0] for t in range(T)])
    W[R_BIAS + 5, 0:T * T1] = np.concatenate([Pn["bt1"][t, 0] for t in range(T)])
    W[R_BIAS + 6, 0:T] = np.concatenate([Pn["bt2"][t, 0] for t in range(T)])
    return jnp.asarray(W)


# ----- pure numpy reference (mirrors PyTorch forward, eval mode) -----
def reference(x, P):
    x = np.asarray(x); Pn = {k: np.asarray(v) for k, v in P.items()}
    emb = x @ Pn["wnum"] + Pn["bnum"][0]
    feas = []
    for e in range(EXPERT_NUM):
        h = np.maximum(emb @ Pn["we0"][e] + Pn["be0"][e, 0], 0.0)
        h = np.maximum(h @ Pn["we1"][e] + Pn["be1"][e, 0], 0.0)
        feas.append(h)
    fea = np.stack(feas, axis=1)                                   # (B, E, D1)
    outs = []
    for t in range(TASK_NUM):
        logits = emb @ Pn["wgate"][t] + Pn["bgate"][t, 0]
        p = np.exp(logits - logits.max(-1, keepdims=True))
        gate = p / p.sum(-1, keepdims=True)
        tf = np.einsum("be,bed->bd", gate, fea)
        h = np.maximum(tf @ Pn["wt0"][t] + Pn["bt0"][t, 0], 0.0)
        h = np.maximum(h @ Pn["wt1"][t] + Pn["bt1"][t, 0], 0.0)
        y = h @ Pn["wt2"][t] + Pn["bt2"][t, 0]
        outs.append(1.0 / (1.0 + np.exp(-y[:, 0])))
    return np.stack(outs, axis=1)


if __name__ == "__main__":
    key = jax.random.PRNGKey(0)
    kx, kp = jax.random.split(key)
    x = jax.random.normal(kx, (BATCH, INPUT_NUM), jnp.float32)
    params = init_params(kp)
    wblob = pack_params(params)

    out = mmoe_forward(x, wblob)
    out = jax.block_until_ready(out)

    ref = reference(x, params)
    np.testing.assert_allclose(np.asarray(out), ref, rtol=1e-4, atol=1e-5)
    print("KERNEL_OK")
</pallas_src>

<mosaic_0001>
module attributes {stable_mosaic.version = 11 : i64} {
  func.func @mmoe_kernel(%arg0: i32, %arg1: memref<8x16xf32, #tpu.memory_space<vmem>>, %arg2: memref<440x192xf32, #tpu.memory_space<vmem>>, %arg3: memref<8x2xf32, #tpu.memory_space<vmem>>) attributes {dimension_semantics = [#tpu.dimension_semantics<parallel>], iteration_bounds = array<i64: 2>, scalar_prefetch = 0 : i64, scratch_operands = 0 : i64, tpu.core_type = #tpu.core_type<tc>, window_params = [{transform_indices = @transform_0, window_bounds = array<i64: 8, 16>}, {pipeline_mode = #tpu.pipeline_mode<synchronous>, transform_indices = @transform_1, window_bounds = array<i64: 440, 192>}, {transform_indices = @transform_2, window_bounds = array<i64: 8, 2>}]} {
    %c0 = arith.constant 0 : index
    %c0_0 = arith.constant 0 : index
    %0 = vector.load %arg1[%c0, %c0_0] : memref<8x16xf32, #tpu.memory_space<vmem>>, vector<8x16xf32>
    %c0_1 = arith.constant 0 : index
    %c0_2 = arith.constant 0 : index
    %1 = vector.load %arg2[%c0_1, %c0_2] : memref<440x192xf32, #tpu.memory_space<vmem>>, vector<16x32xf32>
    %c16 = arith.constant 16 : index
    %c0_3 = arith.constant 0 : index
    %2 = vector.load %arg2[%c16, %c0_3] : memref<440x192xf32, #tpu.memory_space<vmem>>, vector<32x6xf32>
    %c48 = arith.constant 48 : index
    %c0_4 = arith.constant 0 : index
    %3 = vector.load %arg2[%c48, %c0_4] : memref<440x192xf32, #tpu.memory_space<vmem>>, vector<32x192xf32>
    %c80 = arith.constant 80 : index
    %c0_5 = arith.constant 0 : index
    %4 = vector.load %arg2[%c80, %c0_5] : memref<440x192xf32, #tpu.memory_space<vmem>>, vector<192x96xf32>
    %c272 = arith.constant 272 : index
    %c0_6 = arith.constant 0 : index
    %5 = vector.load %arg2[%c272, %c0_6] : memref<440x192xf32, #tpu.memory_space<vmem>>, vector<64x64xf32>
    %c336 = arith.constant 336 : index
    %c0_7 = arith.constant 0 : index
    %6 = vector.load %arg2[%c336, %c0_7] : memref<440x192xf32, #tpu.memory_space<vmem>>, vector<64x32xf32>
    %c400 = arith.constant 400 : index
    %c0_8 = arith.constant 0 : index
    %7 = vector.load %arg2[%c400, %c0_8] : memref<440x192xf32, #tpu.memory_space<vmem>>, vector<32x2xf32>
    %c432 = arith.constant 432 : index
    %c0_9 = arith.constant 0 : index
    %8 = vector.load %arg2[%c432, %c0_9] : memref<440x192xf32, #tpu.memory_space<vmem>>, vector<1x32xf32>
    %c433 = arith.constant 433 : index
    %c0_10 = arith.constant 0 : index
    %9 = vector.load %arg2[%c433, %c0_10] : memref<440x192xf32, #tpu.memory_space<vmem>>, vector<1x6xf32>
    %c434 = arith.constant 434 : index
    %c0_11 = arith.constant 0 : index
    %10 = vector.load %arg2[%c434, %c0_11] : memref<440x192xf32, #tpu.memory_space<vmem>>, vector<1x192xf32>
    %c435 = arith.constant 435 : index
    %c0_12 = arith.constant 0 : index
    %11 = vector.load %arg2[%c435, %c0_12] : memref<440x192xf32, #tpu.memory_space<vmem>>, vector<1x96xf32>
    %c436 = arith.constant 436 : index
    %c0_13 = arith.constant 0 : index
    %12 = vector.load %arg2[%c436, %c0_13] : memref<440x192xf32, #tpu.memory_space<vmem>>, vector<1x64xf32>
    %c437 = arith.constant 437 : index
    %c0_14 = arith.constant 0 : index
    %13 = vector.load %arg2[%c437, %c0_14] : memref<440x192xf32, #tpu.memory_space<vmem>>, vector<1x32xf32>
    %c438 = arith.constant 438 : index
    %c0_15 = arith.constant 0 : index
    %14 = vector.load %arg2[%c438, %c0_15] : memref<440x192xf32, #tpu.memory_space<vmem>>, vector<1x2xf32>
    %cst = arith.constant dense<0.000000e+00> : vector<8x32xf32>
    %15 = tpu.matmul %0, %1, %cst {dimension_numbers = #tpu.dot_dimension_numbers<[1], [0], [0], [1], [0, 0, 1, 1], [], []>} : vector<8x16xf32>, vector<16x32xf32>, vector<8x32xf32> -> vector<8x32xf32>
    %16 = vector.broadcast %8 : vector<1x32xf32> to vector<8x32xf32>
    %17 = arith.addf %15, %16 : vector<8x32xf32>
    %cst_16 = arith.constant dense<0.000000e+00> : vector<8x192xf32>
    %18 = tpu.matmul %17, %3, %cst_16 {dimension_numbers = #tpu.dot_dimension_numbers<[1], [0], [0], [1], [0, 0, 1, 1], [], []>} : vector<8x32xf32>, vector<32x192xf32>, vector<8x192xf32> -> vector<8x192xf32>
    %19 = vector.broadcast %10 : vector<1x192xf32> to vector<8x192xf32>
    %20 = arith.addf %18, %19 : vector<8x192xf32>
    %cst_17 = arith.constant 0.000000e+00 : f32
    %21 = vector.broadcast %cst_17 : f32 to vector<8x192xf32>
    %22 = arith.maximumf %20, %21 : vector<8x192xf32>
    %cst_18 = arith.constant dense<0.000000e+00> : vector<8x96xf32>
    %23 = tpu.matmul %22, %4, %cst_18 {dimension_numbers = #tpu.dot_dimension_numbers<[1], [0], [0], [1], [0, 0, 1, 1], [], []>} : vector<8x192xf32>, vector<192x96xf32>, vector<8x96xf32> -> vector<8x96xf32>
    %24 = vector.broadcast %11 : vector<1x96xf32> to vector<8x96xf32>
    %25 = arith.addf %23, %24 : vector<8x96xf32>
    %cst_19 = arith.constant 0.000000e+00 : f32
    %26 = vector.broadcast %cst_19 : f32 to vector<8x96xf32>
    %27 = arith.maximumf %25, %26 : vector<8x96xf32>
    %cst_20 = arith.constant dense<0.000000e+00> : vector<8x6xf32>
    %28 = tpu.matmul %17, %2, %cst_20 {dimension_numbers = #tpu.dot_dimension_numbers<[1], [0], [0], [1], [0, 0, 1, 1], [], []>} : vector<8x32xf32>, vector<32x6xf32>, vector<8x6xf32> -> vector<8x6xf32>
    %29 = vector.broadcast %9 : vector<1x6xf32> to vector<8x6xf32>
    %30 = arith.addf %28, %29 : vector<8x6xf32>
    %31 = vector.extract_strided_slice %30 {offsets = [0, 0], sizes = [8, 3], strides = [1, 1]} : vector<8x6xf32> to vector<8x3xf32>
    %cst_21 = arith.constant dense<0xFF800000> : vector<8xf32>
    %32 = vector.multi_reduction <maximumf>, %31, %cst_21 [1] : vector<8x3xf32> to vector<8xf32>
    %33 = vector.shape_cast %32 : vector<8xf32> to vector<8x1xf32>
    %34 = vector.broadcast %33 : vector<8x1xf32> to vector<8x3xf32>
    %35 = arith.subf %31, %34 : vector<8x3xf32>
    %36 = math.exp %35 : vector<8x3xf32>
    %cst_22 = arith.constant dense<0.000000e+00> : vector<8xf32>
    %37 = vector.multi_reduction <add>, %36, %cst_22 [1] : vector<8x3xf32> to vector<8xf32>
    %38 = vector.shape_cast %37 : vector<8xf32> to vector<8x1xf32>
    %39 = vector.broadcast %38 : vector<8x1xf32> to vector<8x3xf32>
    %40 = arith.divf %36, %39 : vector<8x3xf32>
    %41 = vector.extract_strided_slice %40 {offsets = [0, 0], sizes = [8, 1], strides = [1, 1]} : vector<8x3xf32> to vector<8x1xf32>
    %42 = vector.extract_strided_slice %27 {offsets = [0, 0], sizes = [8, 32], strides = [1, 1]} : vector<8x96xf32> to vector<8x32xf32>
    %43 = vector.broadcast %41 : vector<8x1xf32> to vector<8x32xf32>
    %44 = arith.mulf %43, %42 : vector<8x32xf32>
    %45 = vector.extract_strided_slice %40 {offsets = [0, 1], sizes = [8, 1], strides = [1, 1]} : vector<8x3xf32> to vector<8x1xf32>
    %46 = vector.extract_strided_slice %27 {offsets = [0, 32], sizes = [8, 32], strides = [1, 1]} : vector<8x96xf32> to vector<8x32xf32>
    %47 = vector.broadcast %45 : vector<8x1xf32> to vector<8x32xf32>
    %48 = arith.mulf %47, %46 : vector<8x32xf32>
    %49 = arith.addf %44, %48 : vector<8x32xf32>
    %50 = vector.extract_strided_slice %40 {offsets = [0, 2], sizes = [8, 1], strides = [1, 1]} : vector<8x3xf32> to vector<8x1xf32>
    %51 = vector.extract_strided_slice %27 {offsets = [0, 64], sizes = [8, 32], strides = [1, 1]} : vector<8x96xf32> to vector<8x32xf32>
    %52 = vector.broadcast %50 : vector<8x1xf32> to vector<8x32xf32>
    %53 = arith.mulf %52, %51 : vector<8x32xf32>
    %54 = arith.addf %49, %53 : vector<8x32xf32>
    %55 = vector.extract_strided_slice %30 {offsets = [0, 3], sizes = [8, 3], strides = [1, 1]} : vector<8x6xf32> to vector<8x3xf32>
    %cst_23 = arith.constant dense<0xFF800000> : vector<8xf32>
    %56 = vector.multi_reduction <maximumf>, %55, %cst_23 [1] : vector<8x3xf32> to vector<8xf32>
    %57 = vector.shape_cast %56 : vector<8xf32> to vector<8x1xf32>
    %58 = vector.broadcast %57 : vector<8x1xf32> to vector<8x3xf32>
    %59 = arith.subf %55, %58 : vector<8x3xf32>
    %60 = math.exp %59 : vector<8x3xf32>
    %cst_24 = arith.constant dense<0.000000e+00> : vector<8xf32>
    %61 = vector.multi_reduction <add>, %60, %cst_24 [1] : vector<8x3xf32> to vector<8xf32>
    %62 = vector.shape_cast %61 : vector<8xf32> to vector<8x1xf32>
    %63 = vector.broadcast %62 : vector<8x1xf32> to vector<8x3xf32>
    %64 = arith.divf %60, %63 : vector<8x3xf32>
    %65 = vector.extract_strided_slice %64 {offsets = [0, 0], sizes = [8, 1], strides = [1, 1]} : vector<8x3xf32> to vector<8x1xf32>
    %66 = vector.extract_strided_slice %27 {offsets = [0, 0], sizes = [8, 32], strides = [1, 1]} : vector<8x96xf32> to vector<8x32xf32>
    %67 = vector.broadcast %65 : vector<8x1xf32> to vector<8x32xf32>
    %68 = arith.mulf %67, %66 : vector<8x32xf32>
    %69 = vector.extract_strided_slice %64 {offsets = [0, 1], sizes = [8, 1], strides = [1, 1]} : vector<8x3xf32> to vector<8x1xf32>
    %70 = vector.extract_strided_slice %27 {offsets = [0, 32], sizes = [8, 32], strides = [1, 1]} : vector<8x96xf32> to vector<8x32xf32>
    %71 = vector.broadcast %69 : vector<8x1xf32> to vector<8x32xf32>
    %72 = arith.mulf %71, %70 : vector<8x32xf32>
    %73 = arith.addf %68, %72 : vector<8x32xf32>
    %74 = vector.extract_strided_slice %64 {offsets = [0, 2], sizes = [8, 1], strides = [1, 1]} : vector<8x3xf32> to vector<8x1xf32>
    %75 = vector.extract_strided_slice %27 {offsets = [0, 64], sizes = [8, 32], strides = [1, 1]} : vector<8x96xf32> to vector<8x32xf32>
    %76 = vector.broadcast %74 : vector<8x1xf32> to vector<8x32xf32>
    %77 = arith.mulf %76, %75 : vector<8x32xf32>
    %78 = arith.addf %73, %77 : vector<8x32xf32>
    %79 = tpu.concatenate %54, %78 in 1 : vector<8x32xf32>, vector<8x32xf32> -> vector<8x64xf32>
    %cst_25 = arith.constant dense<0.000000e+00> : vector<8x64xf32>
    %80 = tpu.matmul %79, %5, %cst_25 {dimension_numbers = #tpu.dot_dimension_numbers<[1], [0], [0], [1], [0, 0, 1, 1], [], []>} : vector<8x64xf32>, vector<64x64xf32>, vector<8x64xf32> -> vector<8x64xf32>
    %81 = vector.broadcast %12 : vector<1x64xf32> to vector<8x64xf32>
    %82 = arith.addf %80, %81 : vector<8x64xf32>
    %cst_26 = arith.constant 0.000000e+00 : f32
    %83 = vector.broadcast %cst_26 : f32 to vector<8x64xf32>
    %84 = arith.maximumf %82, %83 : vector<8x64xf32>
    %cst_27 = arith.constant dense<0.000000e+00> : vector<8x32xf32>
    %85 = tpu.matmul %84, %6, %cst_27 {dimension_numbers = #tpu.dot_dimension_numbers<[1], [0], [0], [1], [0, 0, 1, 1], [], []>} : vector<8x64xf32>, vector<64x32xf32>, vector<8x32xf32> -> vector<8x32xf32>
    %86 = vector.broadcast %13 : vector<1x32xf32> to vector<8x32xf32>
    %87 = arith.addf %85, %86 : vector<8x32xf32>
    %cst_28 = arith.constant 0.000000e+00 : f32
    %88 = vector.broadcast %cst_28 : f32 to vector<8x32xf32>
    %89 = arith.maximumf %87, %88 : vector<8x32xf32>
    %cst_29 = arith.constant dense<0.000000e+00> : vector<8x2xf32>
    %90 = tpu.matmul %89, %7, %cst_29 {dimension_numbers = #tpu.dot_dimension_numbers<[1], [0], [0], [1], [0, 0, 1, 1], [], []>} : vector<8x32xf32>, vector<32x2xf32>, vector<8x2xf32> -> vector<8x2xf32>
    %91 = vector.broadcast %14 : vector<1x2xf32> to vector<8x2xf32>
    %92 = arith.addf %90, %91 : vector<8x2xf32>
    %93 = arith.negf %92 : vector<8x2xf32>
    %94 = math.exp %93 : vector<8x2xf32>
    %cst_30 = arith.constant 1.000000e+00 : f32
    %95 = vector.broadcast %cst_30 : f32 to vector<8x2xf32>
    %96 = arith.addf %95, %94 : vector<8x2xf32>
    %97 = arith.divf %95, %96 : vector<8x2xf32>
    %c0_31 = arith.constant 0 : index
    %c0_32 = arith.constant 0 : index
    %98 = vector.load %arg3[%c0_31, %c0_32] : memref<8x2xf32, #tpu.memory_space<vmem>>, vector<8x2xf32>
    tpu.vector_store %arg3[%c0_31, %c0_32], %97 {strides = array<i32>} : memref<8x2xf32, #tpu.memory_space<vmem>>, vector<8x2xf32>,
    return
  }
  func.func @transform_0(%arg0: i32) -> (i32, i32) {
    %c0_i32 = arith.constant 0 : i32
    %c0_i32_0 = arith.constant 0 : i32
    return %arg0, %c0_i32 : i32, i32
  }
  func.func @transform_1(%arg0: i32) -> (i32, i32) {
    %c0_i32 = arith.constant 0 : i32
    %c0_i32_0 = arith.constant 0 : i32
    %c0_i32_1 = arith.constant 0 : i32
    return %c0_i32, %c0_i32_0 : i32, i32
  }
  func.func @transform_2(%arg0: i32) -> (i32, i32) {
    %c0_i32 = arith.constant 0 : i32
    %c0_i32_0 = arith.constant 0 : i32
    return %arg0, %c0_i32 : i32, i32
  }
}

</mosaic_0001>

<llo_original>
// kernel: tpu_custom_call.1
$region0: #{tpu_custom_call.1}
  #allocation0 [shape = 'u32[]', space=smem, size = 0x4, offset = 0x4, fixed_abs, tag = 'smem constant byte address 0x4 - core index']
  #allocation1 [shape = 'u32[144,128]{1,0:T(1,128)}', space=vmem, size = 0x12000, scoped, tag = 'internal scratch']
  %s0 = inlined_call_operand.vmem [shape: f32[16,16], index: 0, kind: input, shape index: {}]
  %s1 = inlined_call_operand.vmem [shape: f32[440,192], index: 1, kind: input, shape index: {}]
  %s2 = inlined_call_operand.vmem [shape: f32[16,2], index: 2, kind: output, shape index: {}]
  %s3 = sld [smem:[#allocation0]]
  $region41: #{tpu_custom_call.1} parent=0
    _
  %s5 = ssub.s32 1, %s3
  %s6 = scalar_select 0, %s5, %s3
  loop: start=0, step=1, limit=4
  $region2: #{tpu_custom_call.1} parent=0 // loop_pre_header
    _
  $region3: #{tpu_custom_call.1} parent=0 // loop_header
    %s8 = sphi 0, %s12
    %p9 = scmp.ge.s32.totalorder %s8, 4
    %s18 = sphi 0, %s20
    %s21 = sphi 0, %s18
    %s22 = sphi 0, %s21
    %s38 = sphi 0, %s22
    %s42 = sphi 0, %s42
    %s44 = sphi 0, %s42
    %s45 = sphi 0, %s44
    %s59 = sphi 0, %s45
    %s65 = sphi 0, %s67
    %s68 = sphi 0, %s65
    %s69 = sphi 0, %s68
    %s85 = sphi 0, %s69
  $region4: #{tpu_custom_call.1} parent=0 // loop_header_branch
    %11 = sbr.rel (%p9) target = $region8
  $region5: #{tpu_custom_call.1} parent=0 // loop_body
    %s13 = ssub.s32 %s8, 1
    %s14 = ssub.s32 %s8, 2
    %s15 = sadd.s32 %s8, 1
    %s16 = ssub.s32 %s8, %s15
    %p17 = scmp.eq.s32.totalorder %s16, 0
    %s19 = sadd.s32 %s18, 1
    %s20 = scalar_select %p17, %s18, %s19
    %p23 = pneg %p17
    %p24 = scmp.eq.s32.totalorder %s8, 1
    %p25 = por %p23, %p24
    %p26 = scmp.ne.s32.totalorder %s18, %s21
    %p27 = scmp.eq.s32.totalorder %s8, 0
    %p28 = por %p26, %p27
    %p29 = scmp.ne.s32.totalorder %s18, %s21
    %p30 = scmp.eq.s32.totalorder %s13, 1
    %p31 = por %p29, %p30
    %p32 = scmp.ne.s32.totalorder %s21, %s22
    %p33 = scmp.eq.s32.totalorder %s13, 0
    %p34 = por %p32, %p33
    %p35 = scmp.ne.s32.totalorder %s21, %s22
    %p36 = scmp.eq.s32.totalorder %s14, 1
    %p37 = por %p35, %p36
    %p39 = scmp.ne.s32.totalorder %s22, %s38
    %p40 = scmp.eq.s32.totalorder %s14, 0
    %p41 = por %p39, %p40
    %s43 = sadd.s32 %s42, 1
    %p46 = scmp.eq.s32.totalorder %s8, 1
    %p47 = scmp.ne.s32.totalorder %s42, %s44
    %p48 = scmp.eq.s32.totalorder %s8, 0
    %p49 = por %p47, %p48
    %p50 = scmp.ne.s32.totalorder %s42, %s44
    %p51 = scmp.eq.s32.totalorder %s13, 1
    %p52 = por %p50, %p51
    %p53 = scmp.ne.s32.totalorder %s44, %s45
    %p54 = scmp.eq.s32.totalorder %s13, 0
    %p55 = por %p53, %p54
    %p56 = scmp.ne.s32.totalorder %s44, %s45
    %p57 = scmp.eq.s32.totalorder %s14, 1
    %p58 = por %p56, %p57
    %p60 = scmp.ne.s32.totalorder %s45, %s59
    %p61 = scmp.eq.s32.totalorder %s14, 0
    %p62 = por %p60, %p61
    %s63 = ssub.s32 %s8, %s15
    %p64 = scmp.eq.s32.totalorder %s63, 0
    %s66 = sadd.s32 %s65, 1
    %s67 = scalar_select %p64, %s65, %s66
    %p70 = pneg %p64
    %p71 = scmp.eq.s32.totalorder %s8, 1
    %p72 = por %p70, %p71
    %p73 = scmp.ne.s32.totalorder %s65, %s68
    %p74 = scmp.eq.s32.totalorder %s8, 0
    %p75 = por %p73, %p74
    %p76 = scmp.ne.s32.totalorder %s65, %s68
    %p77 = scmp.eq.s32.totalorder %s13, 1
    %p78 = por %p76, %p77
    %p79 = scmp.ne.s32.totalorder %s68, %s69
    %p80 = scmp.eq.s32.totalorder %s13, 0
    %p81 = por %p79, %p80
    %p82 = scmp.ne.s32.totalorder %s68, %s69
    %p83 = scmp.eq.s32.totalorder %s14, 1
    %p84 = por %p82, %p83
    %p86 = scmp.ne.s32.totalorder %s69, %s85
    %p87 = scmp.eq.s32.totalorder %s14, 0
    %p88 = por %p86, %p87
    %p89 = scmp.le.s32.totalorder 1, %s8
    %p90 = scmp.lt.s32.totalorder %s8, 3
    %p91 = pnand %p89, %p90
    %p92 = pneg %p91
    // Predicated region
    $region9: #{tpu_custom_call.1} parent=5 // pred_check
      _
    $region10: #{tpu_custom_call.1} parent=5 // pred_check_branch
      %94 = sbr.rel (%p91) target = $region12
    $region11: #{tpu_custom_call.1} parent=5 // pred_region
      %s95 = ssub.s32 %s8, 1
      // Predicated region
      $region13: #{tpu_custom_call.1} parent=11 // pred_check
        %p96 = pneg %p55
      $region14: #{tpu_custom_call.1} parent=11 // pred_check_branch
        %98 = sbr.rel (%p96) target = $region16
      $region15: #{tpu_custom_call.1} parent=11 // pred_region
        _
      $region16: #{tpu_custom_call.1} parent=11 // pred_fallthru
        _
    $region12: #{tpu_custom_call.1} parent=5 // pred_fallthru
      _
    %p99 = scmp.lt.s32.totalorder %s8, 2
    // Predicated region
    $region17: #{tpu_custom_call.1} parent=5 // pred_check
      %p100 = pneg %p99
    $region18: #{tpu_custom_call.1} parent=5 // pred_check_branch
      %102 = sbr.rel (%p100) target = $region20
    $region19: #{tpu_custom_call.1} parent=5 // pred_region
      // Predicated region
      $region21: #{tpu_custom_call.1} parent=19 // pred_check
        %p103 = pneg %p28
      $region22: #{tpu_custom_call.1} parent=19 // pred_check_branch
        %105 = sbr.rel (%p103) target = $region24
      $region23: #{tpu_custom_call.1} parent=19 // pred_region
        %p106 = scmp.lt.s32.totalorder %s8, 1
        %s107 = scalar_select %p106, %s8, 1
        %s108 = smul.addr %s107, 8
        %s109 = scalar_lea.vmem %s0, %s108
      $region24: #{tpu_custom_call.1} parent=19 // pred_fallthru
        _
    $region20: #{tpu_custom_call.1} parent=5 // pred_fallthru
      _
    %p110 = scmp.le.s32.totalorder 1, %s8
    %p111 = scmp.lt.s32.totalorder %s8, 3
    %p112 = pnand %p110, %p111
    %p113 = pneg %p112
    // Predicated region
    $region25: #{tpu_custom_call.1} parent=5 // pred_check
      _
    $region26: #{tpu_custom_call.1} parent=5 // pred_check_branch
      %115 = sbr.rel (%p112) target = $region28
    $region27: #{tpu_custom_call.1} parent=5 // pred_region
      %s116 = ssub.s32 %s8, 1
      %p117 = scmp.lt.s32.totalorder %s13, 1
      %s118 = scalar_select %p117, %s13, 1
      %s119 = smul.addr %s118, 8
      %s120 = scalar_lea.vmem %s0, %s119
      %p121 = pneg %p34
      %p122 = pneg %p31
      %p123 = pneg %p55
      %p124 = pneg %p52
      %p125 = pneg %p81
      %p126 = pneg %p78
      %p127 = scmp.lt.s32.totalorder %s13, 1
      %s128 = scalar_select %p127, %s13, 1
      %s129 = smul.addr %s128, 8
      %s130 = scalar_lea.vmem %s2, %s129
      %p131 = scmp.lt.s32.totalorder %s13, 1
      %s132 = scalar_select %p131, %s13, 1
      %s133 = smul.addr %s132, 8
      %s134 = scalar_lea.vmem %s0, %s133
      %p135 = scmp.lt.s32.totalorder %s13, 1
      %s136 = scalar_select %p135, %s13, 1
      %s137 = smul.addr %s136, 8
      %s138 = scalar_lea.vmem %s2, %s137
      %v139 = vld [vmem:[%s134] sm:$0xff]
      %v140 = vld [vmem:[%s1] sm:$0xff]
      %v141 = vld [vmem:[%s1 + $0x10] sm:$0xff]
      %v142 = vld [vmem:[%s1 + $0x20] sm:$0xff]
      %v143 = vld [vmem:[%s1 + $0x30] sm:$0xff]
      %v144 = vld [vmem:[%s1 + $0x40] sm:$0xff]
      %v145 = vld [vmem:[%s1 + $0x50] sm:$0xff]
      %v146 = vld [vmem:[%s1 + $0x60] sm:$0xff]
      %v147 = vld [vmem:[%s1 + $0x68] sm:$0xff]
      %v148 = vld [vmem:[%s1 + $0x70] sm:$0xff]
      %v149 = vld [vmem:[%s1 + $0x78] sm:$0xff]
      %v150 = vld [vmem:[%s1 + $0x80] sm:$0xff]
      %v151 = vld [vmem:[%s1 + $0x88] sm:$0xff]
      %v152 = vld [vmem:[%s1 + $0x90] sm:$0xff]
      %v153 = vld [vmem:[%s1 + $0x98] sm:$0xff]
      %v154 = vld [vmem:[%s1 + $0xa0] sm:$0xff]
      %v155 = vld [vmem:[%s1 + $0xb0] sm:$0xff]
      %v156 = vld [vmem:[%s1 + $0xc0] sm:$0xff]
      %v157 = vld [vmem:[%s1 + $0xd0] sm:$0xff]
      %v158 = vld [vmem:[%s1 + $0xe0] sm:$0xff]
      %v159 = vld [vmem:[%s1 + $0xf0] sm:$0xff]
      %v160 = vld [vmem:[%s1 + $0x100] sm:$0xff]
      %v161 = vld [vmem:[%s1 + $0x110] sm:$0xff]
      %v162 = vld [vmem:[%s1 + $0x120] sm:$0xff]
      %v163 = vld [vmem:[%s1 + $0x130] sm:$0xff]
      %v164 = vld [vmem:[%s1 + $0x140] sm:$0xff]
      %v165 = vld [vmem:[%s1 + $0x150] sm:$0xff]
      %v166 = vld [vmem:[%s1 + $0x160] sm:$0xff]
      %v167 = vld [vmem:[%s1 + $0x170] sm:$0xff]
      %v168 = vld [vmem:[%s1 + $0x180] sm:$0xff]
      %v169 = vld [vmem:[%s1 + $0x190] sm:$0xff]
      %v170 = vld [vmem:[%s1 + $0x1a0] sm:$0xff]
      %v171 = vld [vmem:[%s1 + $0x1b0] sm:$0xff]
      %v172 = vld [vmem:[%s1 + $0x1c0] sm:$0xff]
      %v173 = vld [vmem:[%s1 + $0x1d0] sm:$0xff]
      %v174 = vld [vmem:[%s1 + $0x1e0] sm:$0xff]
      %v175 = vld [vmem:[%s1 + $0x1f0] sm:$0xff]
      %v176 = vld [vmem:[%s1 + $0x200] sm:$0xff]
      %v177 = vld [vmem:[%s1 + $0x210] sm:$0xff]
      %v178 = vld [vmem:[%s1 + $0x220] sm:$0xff]
      %v179 = vld [vmem:[%s1 + $0x230] sm:$0xff]
      %v180 = vld [vmem:[%s1 + $0x240] sm:$0xff]
      %v181 = vld [vmem:[%s1 + $0x250] sm:$0xff]
      %v182 = vld [vmem:[%s1 + $0x260] sm:$0xff]
      %v183 = vld [vmem:[%s1 + $0x270] sm:$0xff]
      %v184 = vld [vmem:[%s1 + $0x280] sm:$0xff]
      %v185 = vld [vmem:[%s1 + $0x290] sm:$0xff]
      %v186 = vld [vmem:[%s1 + $0x2a0] sm:$0xff]
      %v187 = vld [vmem:[%s1 + $0x2b0] sm:$0xff]
      %v188 = vld [vmem:[%s1 + $0x2c0] sm:$0xff]
      %v189 = vld [vmem:[%s1 + $0x2d0] sm:$0xff]
      %v190 = vld [vmem:[%s1 + $0x2e0] sm:$0xff]
      %v191 = vld [vmem:[%s1 + $0x2f0] sm:$0xff]
      %v192 = vld [vmem:[%s1 + $0x300] sm:$0xff]
      %v193 = vld [vmem:[%s1 + $0x310] sm:$0xff]
      %v194 = vld [vmem:[%s1 + $0x320] sm:$0xff]
      %v195 = vld [vmem:[%s1 + $0x330] sm:$0xff]
      %v196 = vld [vmem:[%s1 + $0x340] sm:$0xff]
      %v197 = vld [vmem:[%s1 + $0x350] sm:$0xff]
      %v198 = vld [vmem:[%s1 + $0x360] ss:$0 sm:$0xff]
      %v199 = vld [vmem:[%s1 + $0x361] ss:$0 sm:$0xff]
      %s200 = scalar_lea.vmem %s1, 866
      %v201 = vld [vmem:[%s200] ss:$8 sm:$0x3]
      %v202 = vld [vmem:[%s1 + $0x363] ss:$0 sm:$0xff]
      %v203 = vld [vmem:[%s1 + $0x364] ss:$0 sm:$0xff]
      %v204 = vld [vmem:[%s1 + $0x365] ss:$0 sm:$0xff]
      %v205 = vld [vmem:[%s1 + $0x366] ss:$0 sm:$0xff]
      %vm206 = vcmask 130048
      %v208 = vsel %vm206, %v139, 0
      %210 = vmatprep.subr.mxu0 0.0
      %211 = vmatpush1.msra.mxu0 0.0
      %212 = vmatprep.subr.mxu0 0.0
      %213 = vmatpush1.msra.mxu0 0.0
      %214 = vmatprep.subr.mxu0 0.0
      %215 = vmatpush1.msra.mxu0 0.0
      %216 = vmatprep.subr.mxu0 0.0
      %217 = vmatpush1.msra.mxu0 0.0
      %218 = vmatprep.subr.mxu0 0.0
      %219 = vmatpush1.msra.mxu0 0.0
      %220 = vmatprep.subr.mxu0 0.0
      %221 = vmatpush1.msra.mxu0 0.0
      %222 = vmatprep.subr.mxu0 0.0
      %223 = vmatpush1.msra.mxu0 0.0
      %224 = vmatprep.subr.mxu0 0.0
      %225 = vmatpush1.msra.mxu0 0.0
      %226 = vmatprep.subr.mxu0 0.0
      %227 = vmatpush1.msra.mxu0 0.0
      %228 = vmatprep.subr.mxu0 0.0
      %229 = vmatpush1.msra.mxu0 0.0
      %230 = vmatprep.subr.mxu0 0.0
      %231 = vmatpush1.msra.mxu0 0.0
      %232 = vmatprep.subr.mxu0 0.0
      %233 = vmatpush1.msra.mxu0 0.0
      %234 = vmatprep.subr.mxu0 0.0
      %235 = vmatpush1.msra.mxu0 0.0
      %236 = vmatprep.subr.mxu0 0.0
      %237 = vmatpush1.msra.mxu0 0.0
      %238 = vmatprep.subr.mxu0 0.0
      %239 = vmatpush1.msra.mxu0 %v141
      %240 = vmatprep.subr.mxu0 0.0
      %241 = vmatpush1.msra.mxu0 %v140
      %242 = vmatprep.subr.mxu0 0.0
      %243 = vmatpush2.msra.mxu0 0.0
      %244 = vmatprep.subr.mxu0 0.0
      %245 = vmatpush2.msra.mxu0 0.0
      %246 = vmatprep.subr.mxu0 0.0
      %247 = vmatpush2.msra.mxu0 0.0
      %248 = vmatprep.subr.mxu0 0.0
      %249 = vmatpush2.msra.mxu0 0.0
      %250 = vmatprep.subr.mxu0 0.0
      %251 = vmatpush2.msra.mxu0 0.0
      %252 = vmatprep.subr.mxu0 0.0
      %253 = vmatpush2.msra.mxu0 0.0
      %254 = vmatprep.subr.mxu0 0.0
      %255 = vmatpush2.msra.mxu0 0.0
      %256 = vmatprep.subr.mxu0 0.0
      %257 = vmatpush2.msra.mxu0 0.0
      %258 = vmatprep.subr.mxu0 0.0
      %259 = vmatpush2.msra.mxu0 0.0
      %260 = vmatprep.subr.mxu0 0.0
      %261 = vmatpush2.msra.mxu0 0.0
      %262 = vmatprep.subr.mxu0 0.0
      %263 = vmatpush2.msra.mxu0 0.0
      %264 = vmatprep.subr.mxu0 0.0
      %265 = vmatpush2.msra.mxu0 0.0
      %266 = vmatprep.subr.mxu0 0.0
      %267 = vmatpush2.msra.mxu0 0.0
      %268 = vmatprep.subr.mxu0 0.0
      %269 = vmatpush2.msra.mxu0 0.0
      %270 = vmatprep.subr.mxu0 0.0
      %271 = vmatpush2.msra.mxu0 0.0
      %272 = vmatprep.subr.mxu0 0.0
      %273 = vmatpush2.msra.mxu0 0.0
      %274 = vmatprep.mubr.f32.mxu0 0.0
      %275 = vmatmul.mubr.f32.gmra.mxu0 %v208
      %v276 = vpop.f32.mrf.mxu0
      %v277 = vadd.f32 %v198, %v276
      %v278 = vpop.f32.mrf.mxu0
      %279 = vdwg.mxu0
      %v281 = vlaneseq
      %v282 = vshrl.u32 %v281, 7
      %v283 = vsub.s32 0, %v282
      %v284 = vrot.slane %v201, %v283
      %v285 = vlaneseq
      %v286 = vshrl.u32 %v285, 7
      %v287 = vsub.s32 1, %v286
      %v288 = vrot.slane %v201, %v287
      %vm291 = vcmask 261120
      %v293 = vsel %vm291, %v277, 0
      %295 = vmatprep.subr.mxu0 0.0
      %296 = vmatpush1.msra.mxu0 0.0
      %297 = vmatprep.subr.mxu0 0.0
      %298 = vmatpush1.msra.mxu0 0.0
      %299 = vmatprep.subr.mxu0 0.0
      %300 = vmatpush1.msra.mxu0 0.0
      %301 = vmatprep.subr.mxu0 0.0
      %302 = vmatpush1.msra.mxu0 0.0
      %303 = vmatprep.subr.mxu0 0.0
      %304 = vmatpush1.msra.mxu0 0.0
      %305 = vmatprep.subr.mxu0 0.0
      %306 = vmatpush1.msra.mxu0 0.0
      %307 = vmatprep.subr.mxu0 0.0
      %308 = vmatpush1.msra.mxu0 0.0
      %309 = vmatprep.subr.mxu0 0.0
      %310 = vmatpush1.msra.mxu0 0.0
      %311 = vmatprep.subr.mxu0 0.0
      %312 = vmatpush1.msra.mxu0 0.0
      %313 = vmatprep.subr.mxu0 0.0
      %314 = vmatpush1.msra.mxu0 0.0
      %315 = vmatprep.subr.mxu0 0.0
      %316 = vmatpush1.msra.mxu0 0.0
      %317 = vmatprep.subr.mxu0 0.0
      %318 = vmatpush1.msra.mxu0 0.0
      %319 = vmatprep.subr.mxu0 %v153
      %320 = vmatpush1.msra.mxu0 %v152
      %321 = vmatprep.subr.mxu0 %v151
      %322 = vmatpush1.msra.mxu0 %v150
      %323 = vmatprep.subr.mxu0 %v149
      %324 = vmatpush1.msra.mxu0 %v148
      %325 = vmatprep.subr.mxu0 %v147
      %326 = vmatpush1.msra.mxu0 %v146
      %327 = vmatprep.subr.mxu0 0.0
      %328 = vmatpush2.msra.mxu0 0.0
      %329 = vmatprep.subr.mxu0 0.0
      %330 = vmatpush2.msra.mxu0 0.0
      %331 = vmatprep.subr.mxu0 0.0
      %332 = vmatpush2.msra.mxu0 0.0
      %333 = vmatprep.subr.mxu0 0.0
      %334 = vmatpush2.msra.mxu0 0.0
      %335 = vmatprep.subr.mxu0 0.0
      %336 = vmatpush2.msra.mxu0 0.0
      %337 = vmatprep.subr.mxu0 0.0
      %338 = vmatpush2.msra.mxu0 0.0
      %339 = vmatprep.subr.mxu0 0.0
      %340 = vmatpush2.msra.mxu0 0.0
      %341 = vmatprep.subr.mxu0 0.0
      %342 = vmatpush2.msra.mxu0 0.0
      %343 = vmatprep.subr.mxu0 0.0
      %344 = vmatpush2.msra.mxu0 0.0
      %345 = vmatprep.subr.mxu0 0.0
      %346 = vmatpush2.msra.mxu0 0.0
      %347 = vmatprep.subr.mxu0 0.0
      %348 = vmatpush2.msra.mxu0 0.0
      %349 = vmatprep.subr.mxu0 0.0
      %350 = vmatpush2.msra.mxu0 0.0
      %351 = vmatprep.subr.mxu0 0.0
      %352 = vmatpush2.msra.mxu0 0.0
      %353 = vmatprep.subr.mxu0 0.0
      %354 = vmatpush2.msra.mxu0 0.0
      %355 = vmatprep.subr.mxu0 0.0
      %356 = vmatpush2.msra.mxu0 0.0
      %357 = vmatprep.subr.mxu0 0.0
      %358 = vmatpush2.msra.mxu0 0.0
      %359 = vmatprep.mubr.f32.mxu0 0.0
      %360 = vmatmul.mubr.f32.gmra.mxu0 %v293
      %v361 = vpop.f32.mrf.mxu0
      %v362 = vadd.f32 %v284, %v361
      %v363 = vpop.f32.mrf.mxu0
      %v364 = vadd.f32 %v288, %v363
      %365 = vdwg.mxu0
      %v366 = vmax.f32 %v362, 0.0
      %v367 = vmax.f32 %v364, 0.0
      %vm368 = vcmask 523264
      %v370 = vsel %vm368, %v367, 0
      %372 = vmatprep.subr.mxu0 0.0
      %373 = vmatpush1.msra.mxu0 %v169
      %374 = vmatprep.subr.mxu0 0.0
      %375 = vmatpush1.msra.mxu0 %v168
      %376 = vmatprep.subr.mxu0 0.0
      %377 = vmatpush1.msra.mxu0 %v167
      %378 = vmatprep.subr.mxu0 0.0
      %379 = vmatpush1.msra.mxu0 %v166
      %380 = vmatprep.subr.mxu0 0.0
      %381 = vmatpush1.msra.mxu0 %v165
      %382 = vmatprep.subr.mxu0 0.0
      %383 = vmatpush1.msra.mxu0 %v164
      %384 = vmatprep.subr.mxu0 0.0
      %385 = vmatpush1.msra.mxu0 %v163
      %386 = vmatprep.subr.mxu0 0.0
      %387 = vmatpush1.msra.mxu0 %v162
      %388 = vmatprep.subr.mxu0 0.0
      %389 = vmatpush1.msra.mxu0 %v161
      %390 = vmatprep.subr.mxu0 0.0
      %391 = vmatpush1.msra.mxu0 %v160
      %392 = vmatprep.subr.mxu0 0.0
      %393 = vmatpush1.msra.mxu0 %v159
      %394 = vmatprep.subr.mxu0 0.0
      %395 = vmatpush1.msra.mxu0 %v158
      %396 = vmatprep.subr.mxu0 0.0
      %397 = vmatpush1.msra.mxu0 %v157
      %398 = vmatprep.subr.mxu0 0.0
      %399 = vmatpush1.msra.mxu0 %v156
      %400 = vmatprep.subr.mxu0 0.0
      %401 = vmatpush1.msra.mxu0 %v155
      %402 = vmatprep.subr.mxu0 0.0
      %403 = vmatpush1.msra.mxu0 %v154
      %404 = vmatprep.subr.mxu0 0.0
      %405 = vmatpush2.msra.mxu0 0.0
      %406 = vmatprep.subr.mxu0 0.0
      %407 = vmatpush2.msra.mxu0 0.0
      %408 = vmatprep.subr.mxu0 0.0
      %409 = vmatpush2.msra.mxu0 0.0
      %410 = vmatprep.subr.mxu0 0.0
      %411 = vmatpush2.msra.mxu0 0.0
      %412 = vmatprep.subr.mxu0 0.0
      %413 = vmatpush2.msra.mxu0 0.0
      %414 = vmatprep.subr.mxu0 0.0
      %415 = vmatpush2.msra.mxu0 0.0
      %416 = vmatprep.subr.mxu0 0.0
      %417 = vmatpush2.msra.mxu0 0.0
      %418 = vmatprep.subr.mxu0 0.0
      %419 = vmatpush2.msra.mxu0 0.0
      %420 = vmatprep.subr.mxu0 0.0
      %421 = vmatpush2.msra.mxu0 %v177
      %422 = vmatprep.subr.mxu0 0.0
      %423 = vmatpush2.msra.mxu0 %v176
      %424 = vmatprep.subr.mxu0 0.0
      %425 = vmatpush2.msra.mxu0 %v175
      %426 = vmatprep.subr.mxu0 0.0
      %427 = vmatpush2.msra.mxu0 %v174
      %428 = vmatprep.subr.mxu0 0.0
      %429 = vmatpush2.msra.mxu0 %v173
      %430 = vmatprep.subr.mxu0 0.0
      %431 = vmatpush2.msra.mxu0 %v172
      %432 = vmatprep.subr.mxu0 0.0
      %433 = vmatpush2.msra.mxu0 %v171
      %434 = vmatprep.subr.mxu0 0.0
      %435 = vmatpush2.msra.mxu0 %v170
      %436 = vmatprep.mubr.f32.mxu0 %v370
      %437 = vmatmul.mubr.f32.gmra.mxu0 %v366
      %v438 = vpop.f32.mrf.mxu0
      %v439 = vadd.f32 %v202, %v438
      %v440 = vpop.f32.mrf.mxu0
      %441 = vdwg.mxu0
      %v442 = vmax.f32 %v439, 0.0
      %443 = vmatprep.subr.mxu0 0.0
      %444 = vmatpush1.msra.mxu0 0.0
      %445 = vmatprep.subr.mxu0 0.0
      %446 = vmatpush1.msra.mxu0 0.0
      %447 = vmatprep.subr.mxu0 0.0
      %448 = vmatpush1.msra.mxu0 0.0
      %449 = vmatprep.subr.mxu0 0.0
      %450 = vmatpush1.msra.mxu0 0.0
      %451 = vmatprep.subr.mxu0 0.0
      %452 = vmatpush1.msra.mxu0 0.0
      %453 = vmatprep.subr.mxu0 0.0
      %454 = vmatpush1.msra.mxu0 0.0
      %455 = vmatprep.subr.mxu0 0.0
      %456 = vmatpush1.msra.mxu0 0.0
      %457 = vmatprep.subr.mxu0 0.0
      %458 = vmatpush1.msra.mxu0 0.0
      %459 = vmatprep.subr.mxu0 0.0
      %460 = vmatpush1.msra.mxu0 0.0
      %461 = vmatprep.subr.mxu0 0.0
      %462 = vmatpush1.msra.mxu0 0.0
      %463 = vmatprep.subr.mxu0 0.0
      %464 = vmatpush1.msra.mxu0 0.0
      %465 = vmatprep.subr.mxu0 0.0
      %466 = vmatpush1.msra.mxu0 0.0
      %467 = vmatprep.subr.mxu0 0.0
      %468 = vmatpush1.msra.mxu0 %v145
      %469 = vmatprep.subr.mxu0 0.0
      %470 = vmatpush1.msra.mxu0 %v144
      %471 = vmatprep.subr.mxu0 0.0
      %472 = vmatpush1.msra.mxu0 %v143
      %473 = vmatprep.subr.mxu0 0.0
      %474 = vmatpush1.msra.mxu0 %v142
      %475 = vmatprep.subr.mxu0 0.0
      %476 = vmatpush2.msra.mxu0 0.0
      %477 = vmatprep.subr.mxu0 0.0
      %478 = vmatpush2.msra.mxu0 0.0
      %479 = vmatprep.subr.mxu0 0.0
      %480 = vmatpush2.msra.mxu0 0.0
      %481 = vmatprep.subr.mxu0 0.0
      %482 = vmatpush2.msra.mxu0 0.0
      %483 = vmatprep.subr.mxu0 0.0
      %484 = vmatpush2.msra.mxu0 0.0
      %485 = vmatprep.subr.mxu0 0.0
      %486 = vmatpush2.msra.mxu0 0.0
      %487 = vmatprep.subr.mxu0 0.0
      %488 = vmatpush2.msra.mxu0 0.0
      %489 = vmatprep.subr.mxu0 0.0
      %490 = vmatpush2.msra.mxu0 0.0
      %491 = vmatprep.subr.mxu0 0.0
      %492 = vmatpush2.msra.mxu0 0.0
      %493 = vmatprep.subr.mxu0 0.0
      %494 = vmatpush2.msra.mxu0 0.0
      %495 = vmatprep.subr.mxu0 0.0
      %496 = vmatpush2.msra.mxu0 0.0
      %497 = vmatprep.subr.mxu0 0.0
      %498 = vmatpush2.msra.mxu0 0.0
      %499 = vmatprep.subr.mxu0 0.0
      %500 = vmatpush2.msra.mxu0 0.0
      %501 = vmatprep.subr.mxu0 0.0
      %502 = vmatpush2.msra.mxu0 0.0
      %503 = vmatprep.subr.mxu0 0.0
      %504 = vmatpush2.msra.mxu0 0.0
      %505 = vmatprep.subr.mxu0 0.0
      %506 = vmatpush2.msra.mxu0 0.0
      %507 = vmatprep.mubr.f32.mxu0 0.0
      %508 = vmatmul.mubr.f32.gmra.mxu0 %v293
      %v509 = vpop.f32.mrf.mxu0
      %v510 = vadd.f32 %v199, %v509
      %v511 = vpop.f32.mrf.mxu0
      %512 = vdwg.mxu0
      %vm513 = vcmask 23552
      %v514 = vsel %vm513, %v510, -inf
      %515 = vmax.xlane.f32.xlu0 %v514
      %v516 = vpop.xlane.xlu0 %515
      %v517 = vsub.f32 %v510, %v516
      %v518 = vmul.f32 %v517, 1.442695
      %v519 = vpow.pop %v518
      %v520 = vsel %vm513, %v519, 0.0
      %521 = vadd.xlane.f32.xlu0 %v520
      %v522 = vpop.xlane.xlu0 %521
      %v523 = vrcp.pop %v522
      %v524 = vmul.f32 %v519, %v523
      %526 = vset.pattern.permute.xlu0 0
      %527 = vperm.xlu0 %526, %v524
      %v528 = vpop.permute.xlu0 %527
      %v530 = vmul.f32 %v528, %v442
      %531 = vset.pattern.permute.xlu0 1
      %532 = vperm.xlu0 %531, %v524
      %v533 = vpop.permute.xlu0 %532
      %v535 = vmul.f32 %v533, %v442
      %537 = vrot.lane.b32.xlu0 %v535, 96
      %v538 = vpop.permute.xlu0 %537
      %v540 = vadd.f32 %v530, %v538
      %541 = vset.pattern.permute.xlu0 2
      %542 = vperm.xlu0 %541, %v524
      %v543 = vpop.permute.xlu0 %542
      %v545 = vmul.f32 %v543, %v442
      %547 = vrot.lane.b32.xlu0 %v545, 64
      %v548 = vpop.permute.xlu0 %547
      %v550 = vadd.f32 %v540, %v548
      %vm551 = vcmask 48152
      %v552 = vsel %vm551, %v510, -inf
      %553 = vmax.xlane.f32.xlu0 %v552
      %v554 = vpop.xlane.xlu0 %553
      %v555 = vsub.f32 %v510, %v554
      %v556 = vmul.f32 %v555, 1.442695
      %v557 = vpow.pop %v556
      %559 = vrot.lane.b32.xlu0 %v557, 125
      %v560 = vpop.permute.xlu0 %559
      %v562 = vsel %vm513, %v560, 0.0
      %563 = vadd.xlane.f32.xlu0 %v562
      %v564 = vpop.xlane.xlu0 %563
      %v565 = vrcp.pop %v564
      %v566 = vmul.f32 %v557, %v565
      %568 = vset.pattern.permute.xlu0 3
      %569 = vperm.xlu0 %568, %v566
      %v570 = vpop.permute.xlu0 %569
      %v572 = vmul.f32 %v570, %v442
      %573 = vset.pattern.permute.xlu0 4
      %574 = vperm.xlu0 %573, %v566
      %v575 = vpop.permute.xlu0 %574
      %v577 = vmul.f32 %v575, %v442
      %579 = vrot.lane.b32.xlu0 %v577, 96
      %v580 = vpop.permute.xlu0 %579
      %v582 = vadd.f32 %v572, %v580
      %583 = vset.pattern.permute.xlu0 5
      %584 = vperm.xlu0 %583, %v566
      %v585 = vpop.permute.xlu0 %584
      %v587 = vmul.f32 %v585, %v442
      %589 = vrot.lane.b32.xlu0 %v587, 64
      %v590 = vpop.permute.xlu0 %589
      %v592 = vadd.f32 %v582, %v590
      %594 = vrot.lane.b32.xlu0 %v592, 32
      %v595 = vpop.permute.xlu0 %594
      %v597 = vsel %vm291, %v550, %v595
      %v599 = vsel %vm368, %v597, 0
      %601 = vmatprep.subr.mxu0 0.0
      %602 = vmatpush1.msra.mxu0 0.0
      %603 = vmatprep.subr.mxu0 0.0
      %604 = vmatpush1.msra.mxu0 0.0
      %605 = vmatprep.subr.mxu0 0.0
      %606 = vmatpush1.msra.mxu0 0.0
      %607 = vmatprep.subr.mxu0 0.0
      %608 = vmatpush1.msra.mxu0 0.0
      %609 = vmatprep.subr.mxu0 0.0
      %610 = vmatpush1.msra.mxu0 0.0
      %611 = vmatprep.subr.mxu0 0.0
      %612 = vmatpush1.msra.mxu0 0.0
      %613 = vmatprep.subr.mxu0 0.0
      %614 = vmatpush1.msra.mxu0 0.0
      %615 = vmatprep.subr.mxu0 0.0
      %616 = vmatpush1.msra.mxu0 0.0
      %617 = vmatprep.subr.mxu0 0.0
      %618 = vmatpush1.msra.mxu0 %v185
      %619 = vmatprep.subr.mxu0 0.0
      %620 = vmatpush1.msra.mxu0 %v184
      %621 = vmatprep.subr.mxu0 0.0
      %622 = vmatpush1.msra.mxu0 %v183
      %623 = vmatprep.subr.mxu0 0.0
      %624 = vmatpush1.msra.mxu0 %v182
      %625 = vmatprep.subr.mxu0 0.0
      %626 = vmatpush1.msra.mxu0 %v181
      %627 = vmatprep.subr.mxu0 0.0
      %628 = vmatpush1.msra.mxu0 %v180
      %629 = vmatprep.subr.mxu0 0.0
      %630 = vmatpush1.msra.mxu0 %v179
      %631 = vmatprep.subr.mxu0 0.0
      %632 = vmatpush1.msra.mxu0 %v178
      %633 = vmatprep.subr.mxu0 0.0
      %634 = vmatpush2.msra.mxu0 0.0
      %635 = vmatprep.subr.mxu0 0.0
      %636 = vmatpush2.msra.mxu0 0.0
      %637 = vmatprep.subr.mxu0 0.0
      %638 = vmatpush2.msra.mxu0 0.0
      %639 = vmatprep.subr.mxu0 0.0
      %640 = vmatpush2.msra.mxu0 0.0
      %641 = vmatprep.subr.mxu0 0.0
      %642 = vmatpush2.msra.mxu0 0.0
      %643 = vmatprep.subr.mxu0 0.0
      %644 = vmatpush2.msra.mxu0 0.0
      %645 = vmatprep.subr.mxu0 0.0
      %646 = vmatpush2.msra.mxu0 0.0
      %647 = vmatprep.subr.mxu0 0.0
      %648 = vmatpush2.msra.mxu0 0.0
      %649 = vmatprep.subr.mxu0 0.0
      %650 = vmatpush2.msra.mxu0 0.0
      %651 = vmatprep.subr.mxu0 0.0
      %652 = vmatpush2.msra.mxu0 0.0
      %653 = vmatprep.subr.mxu0 0.0
      %654 = vmatpush2.msra.mxu0 0.0
      %655 = vmatprep.subr.mxu0 0.0
      %656 = vmatpush2.msra.mxu0 0.0
      %657 = vmatprep.subr.mxu0 0.0
      %658 = vmatpush2.msra.mxu0 0.0
      %659 = vmatprep.subr.mxu0 0.0
      %660 = vmatpush2.msra.mxu0 0.0
      %661 = vmatprep.subr.mxu0 0.0
      %662 = vmatpush2.msra.mxu0 0.0
      %663 = vmatprep.subr.mxu0 0.0
      %664 = vmatpush2.msra.mxu0 0.0
      %665 = vmatprep.mubr.f32.mxu0 0.0
      %666 = vmatmul.mubr.f32.gmra.mxu0 %v599
      %v667 = vpop.f32.mrf.mxu0
      %v668 = vadd.f32 %v203, %v667
      %v669 = vpop.f32.mrf.mxu0
      %670 = vdwg.mxu0
      %v671 = vmax.f32 %v668, 0.0
      %v673 = vsel %vm368, %v671, 0
      %675 = vmatprep.subr.mxu0 0.0
      %676 = vmatpush1.msra.mxu0 0.0
      %677 = vmatprep.subr.mxu0 0.0
      %678 = vmatpush1.msra.mxu0 0.0
      %679 = vmatprep.subr.mxu0 0.0
      %680 = vmatpush1.msra.mxu0 0.0
      %681 = vmatprep.subr.mxu0 0.0
      %682 = vmatpush1.msra.mxu0 0.0
      %683 = vmatprep.subr.mxu0 0.0
      %684 = vmatpush1.msra.mxu0 0.0
      %685 = vmatprep.subr.mxu0 0.0
      %686 = vmatpush1.msra.mxu0 0.0
      %687 = vmatprep.subr.mxu0 0.0
      %688 = vmatpush1.msra.mxu0 0.0
      %689 = vmatprep.subr.mxu0 0.0
      %690 = vmatpush1.msra.mxu0 0.0
      %691 = vmatprep.subr.mxu0 0.0
      %692 = vmatpush1.msra.mxu0 %v193
      %693 = vmatprep.subr.mxu0 0.0
      %694 = vmatpush1.msra.mxu0 %v192
      %695 = vmatprep.subr.mxu0 0.0
      %696 = vmatpush1.msra.mxu0 %v191
      %697 = vmatprep.subr.mxu0 0.0
      %698 = vmatpush1.msra.mxu0 %v190
      %699 = vmatprep.subr.mxu0 0.0
      %700 = vmatpush1.msra.mxu0 %v189
      %701 = vmatprep.subr.mxu0 0.0
      %702 = vmatpush1.msra.mxu0 %v188
      %703 = vmatprep.subr.mxu0 0.0
      %704 = vmatpush1.msra.mxu0 %v187
      %705 = vmatprep.subr.mxu0 0.0
      %706 = vmatpush1.msra.mxu0 %v186
      %707 = vmatprep.subr.mxu0 0.0
      %708 = vmatpush2.msra.mxu0 0.0
      %709 = vmatprep.subr.mxu0 0.0
      %710 = vmatpush2.msra.mxu0 0.0
      %711 = vmatprep.subr.mxu0 0.0
      %712 = vmatpush2.msra.mxu0 0.0
      %713 = vmatprep.subr.mxu0 0.0
      %714 = vmatpush2.msra.mxu0 0.0
      %715 = vmatprep.subr.mxu0 0.0
      %716 = vmatpush2.msra.mxu0 0.0
      %717 = vmatprep.subr.mxu0 0.0
      %718 = vmatpush2.msra.mxu0 0.0
      %719 = vmatprep.subr.mxu0 0.0
      %720 = vmatpush2.msra.mxu0 0.0
      %721 = vmatprep.subr.mxu0 0.0
      %722 = vmatpush2.msra.mxu0 0.0
      %723 = vmatprep.subr.mxu0 0.0
      %724 = vmatpush2.msra.mxu0 0.0
      %725 = vmatprep.subr.mxu0 0.0
      %726 = vmatpush2.msra.mxu0 0.0
      %727 = vmatprep.subr.mxu0 0.0
      %728 = vmatpush2.msra.mxu0 0.0
      %729 = vmatprep.subr.mxu0 0.0
      %730 = vmatpush2.msra.mxu0 0.0
      %731 = vmatprep.subr.mxu0 0.0
      %732 = vmatpush2.msra.mxu0 0.0
      %733 = vmatprep.subr.mxu0 0.0
      %734 = vmatpush2.msra.mxu0 0.0
      %735 = vmatprep.subr.mxu0 0.0
      %736 = vmatpush2.msra.mxu0 0.0
      %737 = vmatprep.subr.mxu0 0.0
      %738 = vmatpush2.msra.mxu0 0.0
      %739 = vmatprep.mubr.f32.mxu0 0.0
      %740 = vmatmul.mubr.f32.gmra.mxu0 %v673
      %v741 = vpop.f32.mrf.mxu0
      %v742 = vadd.f32 %v204, %v741
      %v743 = vpop.f32.mrf.mxu0
      %744 = vdwg.mxu0
      %v745 = vmax.f32 %v742, 0.0
      %v747 = vsel %vm291, %v745, 0
      %749 = vmatprep.subr.mxu0 0.0
      %750 = vmatpush1.msra.mxu0 0.0
      %751 = vmatprep.subr.mxu0 0.0
      %752 = vmatpush1.msra.mxu0 0.0
      %753 = vmatprep.subr.mxu0 0.0
      %754 = vmatpush1.msra.mxu0 0.0
      %755 = vmatprep.subr.mxu0 0.0
      %756 = vmatpush1.msra.mxu0 0.0
      %757 = vmatprep.subr.mxu0 0.0
      %758 = vmatpush1.msra.mxu0 0.0
      %759 = vmatprep.subr.mxu0 0.0
      %760 = vmatpush1.msra.mxu0 0.0
      %761 = vmatprep.subr.mxu0 0.0
      %762 = vmatpush1.msra.mxu0 0.0
      %763 = vmatprep.subr.mxu0 0.0
      %764 = vmatpush1.msra.mxu0 0.0
      %765 = vmatprep.subr.mxu0 0.0
      %766 = vmatpush1.msra.mxu0 0.0
      %767 = vmatprep.subr.mxu0 0.0
      %768 = vmatpush1.msra.mxu0 0.0
      %769 = vmatprep.subr.mxu0 0.0
      %770 = vmatpush1.msra.mxu0 0.0
      %771 = vmatprep.subr.mxu0 0.0
      %772 = vmatpush1.msra.mxu0 0.0
      %773 = vmatprep.subr.mxu0 0.0
      %774 = vmatpush1.msra.mxu0 %v197
      %775 = vmatprep.subr.mxu0 0.0
      %776 = vmatpush1.msra.mxu0 %v196
      %777 = vmatprep.subr.mxu0 0.0
      %778 = vmatpush1.msra.mxu0 %v195
      %779 = vmatprep.subr.mxu0 0.0
      %780 = vmatpush1.msra.mxu0 %v194
      %781 = vmatprep.subr.mxu0 0.0
      %782 = vmatpush2.msra.mxu0 0.0
      %783 = vmatprep.subr.mxu0 0.0
      %784 = vmatpush2.msra.mxu0 0.0
      %785 = vmatprep.subr.mxu0 0.0
      %786 = vmatpush2.msra.mxu0 0.0
      %787 = vmatprep.subr.mxu0 0.0
      %788 = vmatpush2.msra.mxu0 0.0
      %789 = vmatprep.subr.mxu0 0.0
      %790 = vmatpush2.msra.mxu0 0.0
      %791 = vmatprep.subr.mxu0 0.0
      %792 = vmatpush2.msra.mxu0 0.0
      %793 = vmatprep.subr.mxu0 0.0
      %794 = vmatpush2.msra.mxu0 0.0
      %795 = vmatprep.subr.mxu0 0.0
      %796 = vmatpush2.msra.mxu0 0.0
      %797 = vmatprep.subr.mxu0 0.0
      %798 = vmatpush2.msra.mxu0 0.0
      %799 = vmatprep.subr.mxu0 0.0
      %800 = vmatpush2.msra.mxu0 0.0
      %801 = vmatprep.subr.mxu0 0.0
      %802 = vmatpush2.msra.mxu0 0.0
      %803 = vmatprep.subr.mxu0 0.0
      %804 = vmatpush2.msra.mxu0 0.0
      %805 = vmatprep.subr.mxu0 0.0
      %806 = vmatpush2.msra.mxu0 0.0
      %807 = vmatprep.subr.mxu0 0.0
      %808 = vmatpush2.msra.mxu0 0.0
      %809 = vmatprep.subr.mxu0 0.0
      %810 = vmatpush2.msra.mxu0 0.0
      %811 = vmatprep.subr.mxu0 0.0
      %812 = vmatpush2.msra.mxu0 0.0
      %813 = vmatprep.mubr.f32.mxu0 0.0
      %814 = vmatmul.mubr.f32.gmra.mxu0 %v747
      %v815 = vpop.f32.mrf.mxu0
      %v816 = vadd.f32 %v205, %v815
      %v817 = vpop.f32.mrf.mxu0
      %818 = vdwg.mxu0
      %v819 = vxor.u32 %v816, 2147483648
      %v820 = vmul.f32 %v819, 1.442695
      %v821 = vpow.pop %v820
      %v822 = vadd.f32 %v821, 1.0
      %v823 = vrcp.pop %v822
      %v824 = vmul.f32 1.0, %v823
      %vm825 = vcmask 15360
      %826 = vst.msk [vmem:[%s138] sm:$0xff] %vm825, %v824
      %p827 = scmp.lt.s32.totalorder %s13, 1
      %s828 = scalar_select %p827, %s13, 1
      %s829 = smul.addr %s828, 8
      %s830 = scalar_lea.vmem %s2, %s829
      // Predicated region
      $region29: #{tpu_custom_call.1} parent=27 // pred_check
        %p831 = pneg %p78
      $region30: #{tpu_custom_call.1} parent=27 // pred_check_branch
        %833 = sbr.rel (%p831) target = $region32
      $region31: #{tpu_custom_call.1} parent=27 // pred_region
        _
      $region32: #{tpu_custom_call.1} parent=27 // pred_fallthru
        _
    $region28: #{tpu_custom_call.1} parent=5 // pred_fallthru
      _
    %p834 = scmp.le.s32.totalorder 2, %s8
    // Predicated region
    $region33: #{tpu_custom_call.1} parent=5 // pred_check
      %p835 = pneg %p834
    $region34: #{tpu_custom_call.1} parent=5 // pred_check_branch
      %837 = sbr.rel (%p835) target = $region36
    $region35: #{tpu_custom_call.1} parent=5 // pred_region
      %s838 = ssub.s32 %s8, 2
      // Predicated region
      $region37: #{tpu_custom_call.1} parent=35 // pred_check
        %p839 = pneg %p84
      $region38: #{tpu_custom_call.1} parent=35 // pred_check_branch
        %841 = sbr.rel (%p839) target = $region40
      $region39: #{tpu_custom_call.1} parent=35 // pred_region
        %p842 = scmp.lt.s32.totalorder %s14, 1
        %s843 = scalar_select %p842, %s14, 1
        %s844 = smul.addr %s843, 8
        %s845 = scalar_lea.vmem %s2, %s844
      $region40: #{tpu_custom_call.1} parent=35 // pred_fallthru
        _
    $region36: #{tpu_custom_call.1} parent=5 // pred_fallthru
      _
  $region6: #{tpu_custom_call.1} parent=0 // loop_footer
    %s12 = sadd.s32 1, %s8
  $region7: #{tpu_custom_call.1} parent=0 // loop_footer_branch
    %7 = sbr.rel target = $region3
  $region8: #{tpu_custom_call.1} parent=0 // loop_exit
    _

</llo_original>
